<compile_context>
chip_gen: v6e
topology: v6e:2x2x1
jax: 0.10.0
libtpu: 0.0.40
codegen_flags: <defaults>
</compile_context>

<pallas_src>
import functools

import jax
import jax.numpy as jnp
from jax.experimental import pallas as pl
from jax.experimental.pallas import tpu as pltpu

EPS = 1e-5
_VMEM_LIMIT = 48 * 1024 * 1024       # scoped-VMEM limit: > v5e's 16 MiB default, < v7x's 64 MiB physical
_FUSED_MAX_BYTES = 10 * 1024 * 1024  # whole-tensor-resident path; 2x(in+out) buffers stay < ~42 MiB everywhere
_BLOCK_BYTES = 8 * 1024 * 1024       # per-grid-step slab target for the streaming fallback


def _largest_divisor_fitting(n, unit_bytes, budget_bytes):
    """Largest divisor d of n with d * unit_bytes <= budget (>= 1)."""
    best = 1
    for d in range(1, n + 1):
        if n % d == 0 and d * unit_bytes <= budget_bytes:
            best = d
    return best
    # TODO(synk): additionally tile the fused C*T axis when a single batch slab
    # exceeds the block budget (only matters for extremely long `step`).


# ----------------------------------------------------------------------------
# Fused single-sweep kernel (tensor resident in VMEM): 2x HBM traffic total.
# ----------------------------------------------------------------------------
def _fused_bn_kernel(inv_n, x_ref, gamma_ref, beta_ref, o_ref):
    x = x_ref[...].astype(jnp.float32)                      # (bs, C, T)
    s = jnp.sum(jnp.sum(x, axis=2, keepdims=True), axis=0, keepdims=True)
    mean = s * inv_n                                        # (1, C, 1)
    d = x - mean
    v = jnp.sum(jnp.sum(d * d, axis=2, keepdims=True), axis=0, keepdims=True)
    var = v * inv_n                                         # biased batch variance
    scale = gamma_ref[...][None] * jax.lax.rsqrt(var + EPS)  # (1, C, 1)
    shift = beta_ref[...][None] - mean * scale
    o_ref[...] = (x * scale + shift).astype(o_ref.dtype)


def _bn_fused(x3, gamma2, beta2):
    bs, C, T = x3.shape
    return pl.pallas_call(
        functools.partial(_fused_bn_kernel, 1.0 / float(bs * T)),
        out_shape=jax.ShapeDtypeStruct((bs, C, T), x3.dtype),
        grid=(1,),
        in_specs=[
            pl.BlockSpec((bs, C, T), lambda i: (0, 0, 0)),
            pl.BlockSpec((C, 1), lambda i: (0, 0)),
            pl.BlockSpec((C, 1), lambda i: (0, 0)),
        ],
        out_specs=pl.BlockSpec((bs, C, T), lambda i: (0, 0, 0)),
        compiler_params=pltpu.CompilerParams(
            dimension_semantics=("arbitrary",),
            vmem_limit_bytes=_VMEM_LIMIT),
    )(x3, gamma2, beta2)


# ----------------------------------------------------------------------------
# Streaming fallback, pass 1: per-block partial stats (fully parallel grid).
# ----------------------------------------------------------------------------
def _stats_kernel(inv_nb, x_ref, sum_ref, m2_ref):
    x = x_ref[...].astype(jnp.float32)                      # (Bb, C, T)
    s = jnp.sum(jnp.sum(x, axis=2, keepdims=True), axis=0, keepdims=True)  # (1, C, 1)
    mean_b = s * inv_nb
    d = x - mean_b
    sum_ref[...] = s
    m2_ref[...] = jnp.sum(jnp.sum(d * d, axis=2, keepdims=True), axis=0, keepdims=True)


def _bn_partial_stats(x3, Bb):
    bs, C, T = x3.shape
    nb = bs // Bb
    return pl.pallas_call(
        functools.partial(_stats_kernel, 1.0 / float(Bb * T)),
        out_shape=(jax.ShapeDtypeStruct((nb, C, 1), jnp.float32),
                   jax.ShapeDtypeStruct((nb, C, 1), jnp.float32)),
        grid=(nb,),
        in_specs=[pl.BlockSpec((Bb, C, T), lambda b: (b, 0, 0))],
        out_specs=(pl.BlockSpec((1, C, 1), lambda b: (b, 0, 0)),
                   pl.BlockSpec((1, C, 1), lambda b: (b, 0, 0))),
        compiler_params=pltpu.CompilerParams(
            dimension_semantics=("parallel",),       # independent partial sums -> 2 TCs on v7x
            vmem_limit_bytes=_VMEM_LIMIT),
    )(x3)


# ----------------------------------------------------------------------------
# Streaming fallback, pass 2: lane-dense apply, y = x * scale + shift.
# ----------------------------------------------------------------------------
def _apply_kernel(x_ref, scale_ref, shift_ref, o_ref):
    o_ref[...] = (x_ref[...].astype(jnp.float32) * scale_ref[...]
                  + shift_ref[...]).astype(o_ref.dtype)


def _bn_apply(x3, scale, shift, Bb):
    bs, C, T = x3.shape
    CT = C * T
    nb = bs // Bb
    # Free reshapes (split batch axis, merge adjacent C,T) -> last dim is lane-dense.
    x_ld = x3.reshape(nb, Bb, CT)
    scale_row = jnp.repeat(scale.reshape(C), T).reshape(1, 1, CT)
    shift_row = jnp.repeat(shift.reshape(C), T).reshape(1, 1, CT)
    y = pl.pallas_call(
        _apply_kernel,
        out_shape=jax.ShapeDtypeStruct((nb, Bb, CT), x3.dtype),
        grid=(nb,),
        in_specs=[
            pl.BlockSpec((1, Bb, CT), lambda b: (b, 0, 0)),
            pl.BlockSpec((1, 1, CT), lambda b: (0, 0, 0)),   # fetched once, resident
            pl.BlockSpec((1, 1, CT), lambda b: (0, 0, 0)),   # fetched once, resident
        ],
        out_specs=pl.BlockSpec((1, Bb, CT), lambda b: (b, 0, 0)),
        compiler_params=pltpu.CompilerParams(
            dimension_semantics=("parallel",),
            vmem_limit_bytes=_VMEM_LIMIT),
    )(x_ld, scale_row, shift_row)
    return y.reshape(bs, C, T)


def _bn_two_pass(x3, gamma2, beta2):
    bs, C, T = x3.shape
    itemsize = jnp.dtype(x3.dtype).itemsize
    Bb = _largest_divisor_fitting(bs, C * T * itemsize, _BLOCK_BYTES)
    sum_b, m2_b = _bn_partial_stats(x3, Bb)                 # (nb, C, 1) each
    n_b = float(Bb * T)
    n = float(bs * T)
    mean_b = sum_b / n_b                                    # per-block means
    mean = jnp.sum(sum_b, axis=0) / n                       # (C, 1) global mean
    # Exact Chan parallel-variance combine (avoids E[x^2]-E[x]^2 cancellation).
    m2 = jnp.sum(m2_b, axis=0) + n_b * jnp.sum((mean_b - mean[None]) ** 2, axis=0)
    var = m2 / n                                            # biased (training-mode BN)
    scale = gamma2 * jax.lax.rsqrt(var + EPS)
    shift = beta2 - mean * scale
    Bb2 = _largest_divisor_fitting(bs, C * T * itemsize, _BLOCK_BYTES)
    return _bn_apply(x3, scale, shift, Bb2)


def norm_data_forward(x, gamma, beta, *, force_two_pass=False):
    """x: (bs, c, num_joints, step); gamma/beta: (c*num_joints,). Training-mode BN.

    Note: nn.BatchNorm1d's running_mean / running_var buffer updates are module
    state and are not produced here (output-only forward).
    """
    bs, c, num_joints, step = x.shape
    C = c * num_joints
    x3 = x.reshape(bs, C, step)                             # metadata-only view
    gamma2 = gamma.reshape(C, 1).astype(jnp.float32)
    beta2 = beta.reshape(C, 1).astype(jnp.float32)
    total_bytes = bs * C * step * jnp.dtype(x.dtype).itemsize
    if (not force_two_pass) and total_bytes <= _FUSED_MAX_BYTES:
        y3 = _bn_fused(x3, gamma2, beta2)
    else:
        y3 = _bn_two_pass(x3, gamma2, beta2)
    return y3.reshape(bs, c, num_joints, step)


def _reference(x, gamma, beta):
    bs, c, J, T = x.shape
    C = c * J
    xr = x.reshape(bs, C, T).astype(jnp.float32)
    mean = jnp.mean(xr, axis=(0, 2), keepdims=True)
    var = jnp.mean((xr - mean) ** 2, axis=(0, 2), keepdims=True)
    y = (xr - mean) / jnp.sqrt(var + EPS)
    y = y * gamma.reshape(1, C, 1) + beta.reshape(1, C, 1)
    return y.reshape(bs, c, J, T)


if __name__ == "__main__":
    # Shapes consistent with the module: BatchNorm1d(dim*25) -> c=dim=4, num_joints=25.
    bs, c, num_joints, step = 2, 4, 25, 16
    C = c * num_joints

    key = jax.random.PRNGKey(0)
    kx, kg, kb = jax.random.split(key, 3)
    x = jax.random.normal(kx, (bs, c, num_joints, step), dtype=jnp.float32)
    # BatchNorm1d default init is gamma=1, beta=0; perturb so scale/shift is exercised.
    gamma = 1.0 + 0.1 * jax.random.normal(kg, (C,), dtype=jnp.float32)
    beta = 0.1 * jax.random.normal(kb, (C,), dtype=jnp.float32)

    y_ref = _reference(x, gamma, beta)

    # Fused (VMEM-resident) path — what this test shape uses by default.
    y_fused = jax.block_until_ready(norm_data_forward(x, gamma, beta))
    assert y_fused.shape == (bs, c, num_joints, step)
    assert jnp.allclose(y_fused, y_ref, atol=1e-4, rtol=1e-4)

    # Streaming two-pass path (exercised explicitly; used automatically for large tensors).
    y_stream = jax.block_until_ready(
        norm_data_forward(x, gamma, beta, force_two_pass=True))
    assert jnp.allclose(y_stream, y_ref, atol=1e-4, rtol=1e-4)

    print("KERNEL_OK")
</pallas_src>

<mosaic_0001>
module attributes {stable_mosaic.version = 11 : i64} {
  func.func @_fused_bn_kernel(%arg0: i32, %arg1: memref<2x100x16xf32, #tpu.memory_space<vmem>>, %arg2: memref<100x1xf32, #tpu.memory_space<vmem>>, %arg3: memref<100x1xf32, #tpu.memory_space<vmem>>, %arg4: memref<2x100x16xf32, #tpu.memory_space<vmem>>) attributes {dimension_semantics = [#tpu.dimension_semantics<arbitrary>], iteration_bounds = array<i64: 1>, scalar_prefetch = 0 : i64, scratch_operands = 0 : i64, tpu.core_type = #tpu.core_type<tc>, window_params = [{pipeline_mode = #tpu.pipeline_mode<synchronous>, transform_indices = @transform_0, window_bounds = array<i64: 2, 100, 16>}, {pipeline_mode = #tpu.pipeline_mode<synchronous>, transform_indices = @transform_1, window_bounds = array<i64: 100, 1>}, {pipeline_mode = #tpu.pipeline_mode<synchronous>, transform_indices = @transform_2, window_bounds = array<i64: 100, 1>}, {pipeline_mode = #tpu.pipeline_mode<synchronous>, transform_indices = @transform_3, window_bounds = array<i64: 2, 100, 16>}]} {
    %c0 = arith.constant 0 : index
    %c0_0 = arith.constant 0 : index
    %c0_1 = arith.constant 0 : index
    %0 = vector.load %arg1[%c0, %c0_0, %c0_1] : memref<2x100x16xf32, #tpu.memory_space<vmem>>, vector<2x100x16xf32>
    %cst = arith.constant dense<0.000000e+00> : vector<2x100xf32>
    %1 = vector.multi_reduction <add>, %0, %cst [2] : vector<2x100x16xf32> to vector<2x100xf32>
    %2 = vector.shape_cast %1 : vector<2x100xf32> to vector<2x100x1xf32>
    %cst_2 = arith.constant dense<0.000000e+00> : vector<100x1xf32>
    %3 = vector.multi_reduction <add>, %2, %cst_2 [0] : vector<2x100x1xf32> to vector<100x1xf32>
    %4 = vector.shape_cast %3 : vector<100x1xf32> to vector<1x100x1xf32>
    %cst_3 = arith.constant 3.125000e-02 : f32
    %5 = vector.broadcast %cst_3 : f32 to vector<1x100x1xf32>
    %6 = arith.mulf %4, %5 : vector<1x100x1xf32>
    %7 = vector.broadcast %6 : vector<1x100x1xf32> to vector<2x100x16xf32>
    %8 = arith.subf %0, %7 : vector<2x100x16xf32>
    %9 = arith.mulf %8, %8 : vector<2x100x16xf32>
    %cst_4 = arith.constant dense<0.000000e+00> : vector<2x100xf32>
    %10 = vector.multi_reduction <add>, %9, %cst_4 [2] : vector<2x100x16xf32> to vector<2x100xf32>
    %11 = vector.shape_cast %10 : vector<2x100xf32> to vector<2x100x1xf32>
    %cst_5 = arith.constant dense<0.000000e+00> : vector<100x1xf32>
    %12 = vector.multi_reduction <add>, %11, %cst_5 [0] : vector<2x100x1xf32> to vector<100x1xf32>
    %13 = vector.shape_cast %12 : vector<100x1xf32> to vector<1x100x1xf32>
    %cst_6 = arith.constant 3.125000e-02 : f32
    %14 = vector.broadcast %cst_6 : f32 to vector<1x100x1xf32>
    %15 = arith.mulf %13, %14 : vector<1x100x1xf32>
    %c0_7 = arith.constant 0 : index
    %c0_8 = arith.constant 0 : index
    %16 = vector.load %arg2[%c0_7, %c0_8] : memref<100x1xf32, #tpu.memory_space<vmem>>, vector<100x1xf32>
    %17 = vector.shape_cast %16 : vector<100x1xf32> to vector<1x100x1xf32>
    %cst_9 = arith.constant 9.99999974E-6 : f32
    %18 = vector.broadcast %cst_9 : f32 to vector<1x100x1xf32>
    %19 = arith.addf %15, %18 : vector<1x100x1xf32>
    %20 = math.rsqrt %19 : vector<1x100x1xf32>
    %21 = arith.mulf %17, %20 : vector<1x100x1xf32>
    %c0_10 = arith.constant 0 : index
    %c0_11 = arith.constant 0 : index
    %22 = vector.load %arg3[%c0_10, %c0_11] : memref<100x1xf32, #tpu.memory_space<vmem>>, vector<100x1xf32>
    %23 = vector.shape_cast %22 : vector<100x1xf32> to vector<1x100x1xf32>
    %24 = arith.mulf %6, %21 : vector<1x100x1xf32>
    %25 = arith.subf %23, %24 : vector<1x100x1xf32>
    %26 = vector.broadcast %21 : vector<1x100x1xf32> to vector<2x100x16xf32>
    %27 = arith.mulf %0, %26 : vector<2x100x16xf32>
    %28 = vector.broadcast %25 : vector<1x100x1xf32> to vector<2x100x16xf32>
    %29 = arith.addf %27, %28 : vector<2x100x16xf32>
    %c0_12 = arith.constant 0 : index
    %c0_13 = arith.constant 0 : index
    %c0_14 = arith.constant 0 : index
    %30 = vector.load %arg4[%c0_12, %c0_13, %c0_14] : memref<2x100x16xf32, #tpu.memory_space<vmem>>, vector<2x100x16xf32>
    tpu.vector_store %arg4[%c0_12, %c0_13, %c0_14], %29 {strides = array<i32>} : memref<2x100x16xf32, #tpu.memory_space<vmem>>, vector<2x100x16xf32>,
    return
  }
  func.func @transform_0(%arg0: i32) -> (i32, i32, i32) {
    %c0_i32 = arith.constant 0 : i32
    %c0_i32_0 = arith.constant 0 : i32
    %c0_i32_1 = arith.constant 0 : i32
    %c0_i32_2 = arith.constant 0 : i32
    return %c0_i32, %c0_i32_0, %c0_i32_1 : i32, i32, i32
  }
  func.func @transform_1(%arg0: i32) -> (i32, i32) {
    %c0_i32 = arith.constant 0 : i32
    %c0_i32_0 = arith.constant 0 : i32
    %c0_i32_1 = arith.constant 0 : i32
    return %c0_i32, %c0_i32_0 : i32, i32
  }
  func.func @transform_2(%arg0: i32) -> (i32, i32) {
    %c0_i32 = arith.constant 0 : i32
    %c0_i32_0 = arith.constant 0 : i32
    %c0_i32_1 = arith.constant 0 : i32
    return %c0_i32, %c0_i32_0 : i32, i32
  }
  func.func @transform_3(%arg0: i32) -> (i32, i32, i32) {
    %c0_i32 = arith.constant 0 : i32
    %c0_i32_0 = arith.constant 0 : i32
    %c0_i32_1 = arith.constant 0 : i32
    %c0_i32_2 = arith.constant 0 : i32
    return %c0_i32, %c0_i32_0, %c0_i32_1 : i32, i32, i32
  }
}

</mosaic_0001>

<llo_original>
// kernel: tpu_custom_call.1
$region0: #{tpu_custom_call.1}
  #allocation0 [shape = 'u32[]', space=smem, size = 0x4, offset = 0x4, fixed_abs, tag = 'smem constant byte address 0x4 - core index']
  #allocation1 [shape = 'u32[144,128]{1,0:T(1,128)}', space=vmem, size = 0x12000, scoped, tag = 'internal scratch']
  %s0 = inlined_call_operand.vmem [shape: f32[2,100,16], index: 0, kind: input, shape index: {}]
  %s1 = inlined_call_operand.vmem [shape: f32[100,1], index: 1, kind: input, shape index: {}]
  %s2 = inlined_call_operand.vmem [shape: f32[100,1], index: 2, kind: input, shape index: {}]
  %s3 = inlined_call_operand.vmem [shape: f32[2,100,16], index: 3, kind: output, shape index: {}]
  %s4 = sld [smem:[#allocation0]]
  $region22: #{tpu_custom_call.1} parent=0
    _
  %s6 = ssub.s32 1, %s4
  %s7 = scalar_select 0, %s6, %s4
  // Predicated region
  $region2: #{tpu_custom_call.1} parent=0 // pred_check
    _
  $region3: #{tpu_custom_call.1} parent=0 // pred_check_branch
    %9 = sbr.rel (0) target = $region5
  $region4: #{tpu_custom_call.1} parent=0 // pred_region
    _
  $region5: #{tpu_custom_call.1} parent=0 // pred_fallthru
    _
  // Predicated region
  $region6: #{tpu_custom_call.1} parent=0 // pred_check
    _
  $region7: #{tpu_custom_call.1} parent=0 // pred_check_branch
    %11 = sbr.rel (0) target = $region9
  $region8: #{tpu_custom_call.1} parent=0 // pred_region
    _
  $region9: #{tpu_custom_call.1} parent=0 // pred_fallthru
    _
  // Predicated region
  $region10: #{tpu_custom_call.1} parent=0 // pred_check
    _
  $region11: #{tpu_custom_call.1} parent=0 // pred_check_branch
    %13 = sbr.rel (0) target = $region13
  $region12: #{tpu_custom_call.1} parent=0 // pred_region
    _
  $region13: #{tpu_custom_call.1} parent=0 // pred_fallthru
    _
  %v14 = vld [vmem:[%s0] sm:$0xff]
  %v15 = vld [vmem:[%s0 + $0x8] sm:$0xff]
  %v16 = vld [vmem:[%s0 + $0x10] sm:$0xff]
  %v17 = vld [vmem:[%s0 + $0x18] sm:$0xff]
  %v18 = vld [vmem:[%s0 + $0x20] sm:$0xff]
  %v19 = vld [vmem:[%s0 + $0x28] sm:$0xff]
  %v20 = vld [vmem:[%s0 + $0x30] sm:$0xff]
  %v21 = vld [vmem:[%s0 + $0x38] sm:$0xff]
  %v22 = vld [vmem:[%s0 + $0x40] sm:$0xff]
  %v23 = vld [vmem:[%s0 + $0x48] sm:$0xff]
  %v24 = vld [vmem:[%s0 + $0x50] sm:$0xff]
  %v25 = vld [vmem:[%s0 + $0x58] sm:$0xff]
  %v26 = vld [vmem:[%s0 + $0x60] sm:$0xf]
  %v27 = vld [vmem:[%s0 + $0x68] sm:$0xff]
  %v28 = vld [vmem:[%s0 + $0x70] sm:$0xff]
  %v29 = vld [vmem:[%s0 + $0x78] sm:$0xff]
  %v30 = vld [vmem:[%s0 + $0x80] sm:$0xff]
  %v31 = vld [vmem:[%s0 + $0x88] sm:$0xff]
  %v32 = vld [vmem:[%s0 + $0x90] sm:$0xff]
  %v33 = vld [vmem:[%s0 + $0x98] sm:$0xff]
  %v34 = vld [vmem:[%s0 + $0xa0] sm:$0xff]
  %v35 = vld [vmem:[%s0 + $0xa8] sm:$0xff]
  %v36 = vld [vmem:[%s0 + $0xb0] sm:$0xff]
  %v37 = vld [vmem:[%s0 + $0xb8] sm:$0xff]
  %v38 = vld [vmem:[%s0 + $0xc0] sm:$0xff]
  %v39 = vld [vmem:[%s0 + $0xc8] sm:$0xf]
  %vm40 = vcmask 130048
  %v41 = vsel %vm40, %v14, 0.0
  %42 = vadd.xlane.f32.xlu0 %v41
  %v43 = vpop.xlane.xlu0 %42
  %v44 = vsel %vm40, %v15, 0.0
  %45 = vadd.xlane.f32.xlu0 %v44
  %v46 = vpop.xlane.xlu0 %45
  %v47 = vsel %vm40, %v16, 0.0
  %48 = vadd.xlane.f32.xlu0 %v47
  %v49 = vpop.xlane.xlu0 %48
  %v50 = vsel %vm40, %v17, 0.0
  %51 = vadd.xlane.f32.xlu0 %v50
  %v52 = vpop.xlane.xlu0 %51
  %v53 = vsel %vm40, %v18, 0.0
  %54 = vadd.xlane.f32.xlu0 %v53
  %v55 = vpop.xlane.xlu0 %54
  %v56 = vsel %vm40, %v19, 0.0
  %57 = vadd.xlane.f32.xlu0 %v56
  %v58 = vpop.xlane.xlu0 %57
  %v59 = vsel %vm40, %v20, 0.0
  %60 = vadd.xlane.f32.xlu0 %v59
  %v61 = vpop.xlane.xlu0 %60
  %v62 = vsel %vm40, %v21, 0.0
  %63 = vadd.xlane.f32.xlu0 %v62
  %v64 = vpop.xlane.xlu0 %63
  %v65 = vsel %vm40, %v22, 0.0
  %66 = vadd.xlane.f32.xlu0 %v65
  %v67 = vpop.xlane.xlu0 %66
  %v68 = vsel %vm40, %v23, 0.0
  %69 = vadd.xlane.f32.xlu0 %v68
  %v70 = vpop.xlane.xlu0 %69
  %v71 = vsel %vm40, %v24, 0.0
  %72 = vadd.xlane.f32.xlu0 %v71
  %v73 = vpop.xlane.xlu0 %72
  %v74 = vsel %vm40, %v25, 0.0
  %75 = vadd.xlane.f32.xlu0 %v74
  %v76 = vpop.xlane.xlu0 %75
  %vm77 = vcmask 125952
  %v78 = vsel %vm77, %v26, 0.0
  %79 = vadd.xlane.f32.xlu0 %v78
  %v80 = vpop.xlane.xlu0 %79
  %v81 = vsel %vm40, %v27, 0.0
  %82 = vadd.xlane.f32.xlu0 %v81
  %v83 = vpop.xlane.xlu0 %82
  %v84 = vsel %vm40, %v28, 0.0
  %85 = vadd.xlane.f32.xlu0 %v84
  %v86 = vpop.xlane.xlu0 %85
  %v87 = vsel %vm40, %v29, 0.0
  %88 = vadd.xlane.f32.xlu0 %v87
  %v89 = vpop.xlane.xlu0 %88
  %v90 = vsel %vm40, %v30, 0.0
  %91 = vadd.xlane.f32.xlu0 %v90
  %v92 = vpop.xlane.xlu0 %91
  %v93 = vsel %vm40, %v31, 0.0
  %94 = vadd.xlane.f32.xlu0 %v93
  %v95 = vpop.xlane.xlu0 %94
  %v96 = vsel %vm40, %v32, 0.0
  %97 = vadd.xlane.f32.xlu0 %v96
  %v98 = vpop.xlane.xlu0 %97
  %v99 = vsel %vm40, %v33, 0.0
  %100 = vadd.xlane.f32.xlu0 %v99
  %v101 = vpop.xlane.xlu0 %100
  %v102 = vsel %vm40, %v34, 0.0
  %103 = vadd.xlane.f32.xlu0 %v102
  %v104 = vpop.xlane.xlu0 %103
  %v105 = vsel %vm40, %v35, 0.0
  %106 = vadd.xlane.f32.xlu0 %v105
  %v107 = vpop.xlane.xlu0 %106
  %v108 = vsel %vm40, %v36, 0.0
  %109 = vadd.xlane.f32.xlu0 %v108
  %v110 = vpop.xlane.xlu0 %109
  %v111 = vsel %vm40, %v37, 0.0
  %112 = vadd.xlane.f32.xlu0 %v111
  %v113 = vpop.xlane.xlu0 %112
  %v114 = vsel %vm40, %v38, 0.0
  %115 = vadd.xlane.f32.xlu0 %v114
  %v116 = vpop.xlane.xlu0 %115
  %v117 = vsel %vm77, %v39, 0.0
  %118 = vadd.xlane.f32.xlu0 %v117
  %v119 = vpop.xlane.xlu0 %118
  %v120 = vadd.f32 %v43, %v83
  %v121 = vadd.f32 %v46, %v86
  %v122 = vadd.f32 %v49, %v89
  %v123 = vadd.f32 %v52, %v92
  %v124 = vadd.f32 %v55, %v95
  %v125 = vadd.f32 %v58, %v98
  %v126 = vadd.f32 %v61, %v101
  %v127 = vadd.f32 %v64, %v104
  %v128 = vadd.f32 %v67, %v107
  %v129 = vadd.f32 %v70, %v110
  %v130 = vadd.f32 %v73, %v113
  %v131 = vadd.f32 %v76, %v116
  %vm132 = vcmask 1043456
  %v133 = vsel %vm132, %v80, 0.0
  %v134 = vsel %vm132, %v119, 0.0
  %v135 = vadd.f32 %v133, %v134
  %v136 = vmul.f32 %v120, 0.03125
  %v137 = vmul.f32 %v121, 0.03125
  %v138 = vmul.f32 %v122, 0.03125
  %v139 = vmul.f32 %v123, 0.03125
  %v140 = vmul.f32 %v124, 0.03125
  %v141 = vmul.f32 %v125, 0.03125
  %v142 = vmul.f32 %v126, 0.03125
  %v143 = vmul.f32 %v127, 0.03125
  %v144 = vmul.f32 %v128, 0.03125
  %v145 = vmul.f32 %v129, 0.03125
  %v146 = vmul.f32 %v130, 0.03125
  %v147 = vmul.f32 %v131, 0.03125
  %v148 = vmul.f32 %v135, 0.03125
  %v149 = vsub.f32 %v14, %v136
  %v150 = vsub.f32 %v15, %v137
  %v151 = vsub.f32 %v16, %v138
  %v152 = vsub.f32 %v17, %v139
  %v153 = vsub.f32 %v18, %v140
  %v154 = vsub.f32 %v19, %v141
  %v155 = vsub.f32 %v20, %v142
  %v156 = vsub.f32 %v21, %v143
  %v157 = vsub.f32 %v22, %v144
  %v158 = vsub.f32 %v23, %v145
  %v159 = vsub.f32 %v24, %v146
  %v160 = vsub.f32 %v25, %v147
  %v161 = vsub.f32 %v26, %v148
  %v162 = vsub.f32 %v27, %v136
  %v163 = vsub.f32 %v28, %v137
  %v164 = vsub.f32 %v29, %v138
  %v165 = vsub.f32 %v30, %v139
  %v166 = vsub.f32 %v31, %v140
  %v167 = vsub.f32 %v32, %v141
  %v168 = vsub.f32 %v33, %v142
  %v169 = vsub.f32 %v34, %v143
  %v170 = vsub.f32 %v35, %v144
  %v171 = vsub.f32 %v36, %v145
  %v172 = vsub.f32 %v37, %v146
  %v173 = vsub.f32 %v38, %v147
  %v174 = vsub.f32 %v39, %v148
  %v175 = vmul.f32 %v149, %v149
  %v176 = vmul.f32 %v150, %v150
  %v177 = vmul.f32 %v151, %v151
  %v178 = vmul.f32 %v152, %v152
  %v179 = vmul.f32 %v153, %v153
  %v180 = vmul.f32 %v154, %v154
  %v181 = vmul.f32 %v155, %v155
  %v182 = vmul.f32 %v156, %v156
  %v183 = vmul.f32 %v157, %v157
  %v184 = vmul.f32 %v158, %v158
  %v185 = vmul.f32 %v159, %v159
  %v186 = vmul.f32 %v160, %v160
  %v187 = vmul.f32 %v161, %v161
  %v188 = vmul.f32 %v162, %v162
  %v189 = vmul.f32 %v163, %v163
  %v190 = vmul.f32 %v164, %v164
  %v191 = vmul.f32 %v165, %v165
  %v192 = vmul.f32 %v166, %v166
  %v193 = vmul.f32 %v167, %v167
  %v194 = vmul.f32 %v168, %v168
  %v195 = vmul.f32 %v169, %v169
  %v196 = vmul.f32 %v170, %v170
  %v197 = vmul.f32 %v171, %v171
  %v198 = vmul.f32 %v172, %v172
  %v199 = vmul.f32 %v173, %v173
  %v200 = vmul.f32 %v174, %v174
  %v201 = vsel %vm40, %v175, 0.0
  %202 = vadd.xlane.f32.xlu0 %v201
  %v203 = vpop.xlane.xlu0 %202
  %v204 = vsel %vm40, %v176, 0.0
  %205 = vadd.xlane.f32.xlu0 %v204
  %v206 = vpop.xlane.xlu0 %205
  %v207 = vsel %vm40, %v177, 0.0
  %208 = vadd.xlane.f32.xlu0 %v207
  %v209 = vpop.xlane.xlu0 %208
  %v210 = vsel %vm40, %v178, 0.0
  %211 = vadd.xlane.f32.xlu0 %v210
  %v212 = vpop.xlane.xlu0 %211
  %v213 = vsel %vm40, %v179, 0.0
  %214 = vadd.xlane.f32.xlu0 %v213
  %v215 = vpop.xlane.xlu0 %214
  %v216 = vsel %vm40, %v180, 0.0
  %217 = vadd.xlane.f32.xlu0 %v216
  %v218 = vpop.xlane.xlu0 %217
  %v219 = vsel %vm40, %v181, 0.0
  %220 = vadd.xlane.f32.xlu0 %v219
  %v221 = vpop.xlane.xlu0 %220
  %v222 = vsel %vm40, %v182, 0.0
  %223 = vadd.xlane.f32.xlu0 %v222
  %v224 = vpop.xlane.xlu0 %223
  %v225 = vsel %vm40, %v183, 0.0
  %226 = vadd.xlane.f32.xlu0 %v225
  %v227 = vpop.xlane.xlu0 %226
  %v228 = vsel %vm40, %v184, 0.0
  %229 = vadd.xlane.f32.xlu0 %v228
  %v230 = vpop.xlane.xlu0 %229
  %v231 = vsel %vm40, %v185, 0.0
  %232 = vadd.xlane.f32.xlu0 %v231
  %v233 = vpop.xlane.xlu0 %232
  %v234 = vsel %vm40, %v186, 0.0
  %235 = vadd.xlane.f32.xlu0 %v234
  %v236 = vpop.xlane.xlu0 %235
  %v237 = vsel %vm77, %v187, 0.0
  %238 = vadd.xlane.f32.xlu0 %v237
  %v239 = vpop.xlane.xlu0 %238
  %v240 = vsel %vm40, %v188, 0.0
  %241 = vadd.xlane.f32.xlu0 %v240
  %v242 = vpop.xlane.xlu0 %241
  %v243 = vsel %vm40, %v189, 0.0
  %244 = vadd.xlane.f32.xlu0 %v243
  %v245 = vpop.xlane.xlu0 %244
  %v246 = vsel %vm40, %v190, 0.0
  %247 = vadd.xlane.f32.xlu0 %v246
  %v248 = vpop.xlane.xlu0 %247
  %v249 = vsel %vm40, %v191, 0.0
  %250 = vadd.xlane.f32.xlu0 %v249
  %v251 = vpop.xlane.xlu0 %250
  %v252 = vsel %vm40, %v192, 0.0
  %253 = vadd.xlane.f32.xlu0 %v252
  %v254 = vpop.xlane.xlu0 %253
  %v255 = vsel %vm40, %v193, 0.0
  %256 = vadd.xlane.f32.xlu0 %v255
  %v257 = vpop.xlane.xlu0 %256
  %v258 = vsel %vm40, %v194, 0.0
  %259 = vadd.xlane.f32.xlu0 %v258
  %v260 = vpop.xlane.xlu0 %259
  %v261 = vsel %vm40, %v195, 0.0
  %262 = vadd.xlane.f32.xlu0 %v261
  %v263 = vpop.xlane.xlu0 %262
  %v264 = vsel %vm40, %v196, 0.0
  %265 = vadd.xlane.f32.xlu0 %v264
  %v266 = vpop.xlane.xlu0 %265
  %v267 = vsel %vm40, %v197, 0.0
  %268 = vadd.xlane.f32.xlu0 %v267
  %v269 = vpop.xlane.xlu0 %268
  %v270 = vsel %vm40, %v198, 0.0
  %271 = vadd.xlane.f32.xlu0 %v270
  %v272 = vpop.xlane.xlu0 %271
  %v273 = vsel %vm40, %v199, 0.0
  %274 = vadd.xlane.f32.xlu0 %v273
  %v275 = vpop.xlane.xlu0 %274
  %v276 = vsel %vm77, %v200, 0.0
  %277 = vadd.xlane.f32.xlu0 %v276
  %v278 = vpop.xlane.xlu0 %277
  %v279 = vadd.f32 %v203, %v242
  %v280 = vadd.f32 %v206, %v245
  %v281 = vadd.f32 %v209, %v248
  %v282 = vadd.f32 %v212, %v251
  %v283 = vadd.f32 %v215, %v254
  %v284 = vadd.f32 %v218, %v257
  %v285 = vadd.f32 %v221, %v260
  %v286 = vadd.f32 %v224, %v263
  %v287 = vadd.f32 %v227, %v266
  %v288 = vadd.f32 %v230, %v269
  %v289 = vadd.f32 %v233, %v272
  %v290 = vadd.f32 %v236, %v275
  %v291 = vsel %vm132, %v239, 0.0
  %v292 = vsel %vm132, %v278, 0.0
  %v293 = vadd.f32 %v291, %v292
  %v294 = vmul.f32 %v279, 0.03125
  %v295 = vmul.f32 %v280, 0.03125
  %v296 = vmul.f32 %v281, 0.03125
  %v297 = vmul.f32 %v282, 0.03125
  %v298 = vmul.f32 %v283, 0.03125
  %v299 = vmul.f32 %v284, 0.03125
  %v300 = vmul.f32 %v285, 0.03125
  %v301 = vmul.f32 %v286, 0.03125
  %v302 = vmul.f32 %v287, 0.03125
  %v303 = vmul.f32 %v288, 0.03125
  %v304 = vmul.f32 %v289, 0.03125
  %v305 = vmul.f32 %v290, 0.03125
  %v306 = vmul.f32 %v293, 0.03125
  %v307 = vld [vmem:[%s1] sm:$0xff]
  %v308 = vld [vmem:[%s1 + $0x8] sm:$0xff]
  %v309 = vld [vmem:[%s1 + $0x10] sm:$0xff]
  %v310 = vld [vmem:[%s1 + $0x18] sm:$0xff]
  %v311 = vld [vmem:[%s1 + $0x20] sm:$0xff]
  %v312 = vld [vmem:[%s1 + $0x28] sm:$0xff]
  %v313 = vld [vmem:[%s1 + $0x30] sm:$0xff]
  %v314 = vld [vmem:[%s1 + $0x38] sm:$0xff]
  %v315 = vld [vmem:[%s1 + $0x40] sm:$0xff]
  %v316 = vld [vmem:[%s1 + $0x48] sm:$0xff]
  %v317 = vld [vmem:[%s1 + $0x50] sm:$0xff]
  %v318 = vld [vmem:[%s1 + $0x58] sm:$0xff]
  %v319 = vld [vmem:[%s1 + $0x60] sm:$0xf]
  %v320 = vadd.f32 %v294, 1e-05
  %v321 = vadd.f32 %v295, 1e-05
  %v322 = vadd.f32 %v296, 1e-05
  %v323 = vadd.f32 %v297, 1e-05
  %v324 = vadd.f32 %v298, 1e-05
  %v325 = vadd.f32 %v299, 1e-05
  %v326 = vadd.f32 %v300, 1e-05
  %v327 = vadd.f32 %v301, 1e-05
  %v328 = vadd.f32 %v302, 1e-05
  %v329 = vadd.f32 %v303, 1e-05
  %v330 = vadd.f32 %v304, 1e-05
  %v331 = vadd.f32 %v305, 1e-05
  %v332 = vadd.f32 %v306, 1e-05
  %v333 = vrsqrt.pop %v320
  %v334 = vrsqrt.pop %v321
  %v335 = vrsqrt.pop %v322
  %v336 = vrsqrt.pop %v323
  %v337 = vrsqrt.pop %v324
  %v338 = vrsqrt.pop %v325
  %v339 = vrsqrt.pop %v326
  %v340 = vrsqrt.pop %v327
  %v341 = vrsqrt.pop %v328
  %v342 = vrsqrt.pop %v329
  %v343 = vrsqrt.pop %v330
  %v344 = vrsqrt.pop %v331
  %v345 = vrsqrt.pop %v332
  %v346 = vmul.f32 %v307, %v333
  %v347 = vmul.f32 %v308, %v334
  %v348 = vmul.f32 %v309, %v335
  %v349 = vmul.f32 %v310, %v336
  %v350 = vmul.f32 %v311, %v337
  %v351 = vmul.f32 %v312, %v338
  %v352 = vmul.f32 %v313, %v339
  %v353 = vmul.f32 %v314, %v340
  %v354 = vmul.f32 %v315, %v341
  %v355 = vmul.f32 %v316, %v342
  %v356 = vmul.f32 %v317, %v343
  %v357 = vmul.f32 %v318, %v344
  %v358 = vmul.f32 %v319, %v345
  %v359 = vld [vmem:[%s2] sm:$0xff]
  %v360 = vld [vmem:[%s2 + $0x8] sm:$0xff]
  %v361 = vld [vmem:[%s2 + $0x10] sm:$0xff]
  %v362 = vld [vmem:[%s2 + $0x18] sm:$0xff]
  %v363 = vld [vmem:[%s2 + $0x20] sm:$0xff]
  %v364 = vld [vmem:[%s2 + $0x28] sm:$0xff]
  %v365 = vld [vmem:[%s2 + $0x30] sm:$0xff]
  %v366 = vld [vmem:[%s2 + $0x38] sm:$0xff]
  %v367 = vld [vmem:[%s2 + $0x40] sm:$0xff]
  %v368 = vld [vmem:[%s2 + $0x48] sm:$0xff]
  %v369 = vld [vmem:[%s2 + $0x50] sm:$0xff]
  %v370 = vld [vmem:[%s2 + $0x58] sm:$0xff]
  %v371 = vld [vmem:[%s2 + $0x60] sm:$0xf]
  %v372 = vmul.f32 %v136, %v346
  %v373 = vmul.f32 %v137, %v347
  %v374 = vmul.f32 %v138, %v348
  %v375 = vmul.f32 %v139, %v349
  %v376 = vmul.f32 %v140, %v350
  %v377 = vmul.f32 %v141, %v351
  %v378 = vmul.f32 %v142, %v352
  %v379 = vmul.f32 %v143, %v353
  %v380 = vmul.f32 %v144, %v354
  %v381 = vmul.f32 %v145, %v355
  %v382 = vmul.f32 %v146, %v356
  %v383 = vmul.f32 %v147, %v357
  %v384 = vmul.f32 %v148, %v358
  %v385 = vsub.f32 %v359, %v372
  %v386 = vsub.f32 %v360, %v373
  %v387 = vsub.f32 %v361, %v374
  %v388 = vsub.f32 %v362, %v375
  %v389 = vsub.f32 %v363, %v376
  %v390 = vsub.f32 %v364, %v377
  %v391 = vsub.f32 %v365, %v378
  %v392 = vsub.f32 %v366, %v379
  %v393 = vsub.f32 %v367, %v380
  %v394 = vsub.f32 %v368, %v381
  %v395 = vsub.f32 %v369, %v382
  %v396 = vsub.f32 %v370, %v383
  %v397 = vsub.f32 %v371, %v384
  %399 = vset.pattern.permute.xlu0 0
  %400 = vperm.xlu0 %399, %v346
  %v401 = vpop.permute.xlu0 %400
  %404 = vset.pattern.permute.xlu0 0
  %405 = vperm.xlu0 %404, %v347
  %v406 = vpop.permute.xlu0 %405
  %409 = vset.pattern.permute.xlu0 0
  %410 = vperm.xlu0 %409, %v348
  %v411 = vpop.permute.xlu0 %410
  %414 = vset.pattern.permute.xlu0 0
  %415 = vperm.xlu0 %414, %v349
  %v416 = vpop.permute.xlu0 %415
  %419 = vset.pattern.permute.xlu0 0
  %420 = vperm.xlu0 %419, %v350
  %v421 = vpop.permute.xlu0 %420
  %424 = vset.pattern.permute.xlu0 0
  %425 = vperm.xlu0 %424, %v351
  %v426 = vpop.permute.xlu0 %425
  %429 = vset.pattern.permute.xlu0 0
  %430 = vperm.xlu0 %429, %v352
  %v431 = vpop.permute.xlu0 %430
  %434 = vset.pattern.permute.xlu0 0
  %435 = vperm.xlu0 %434, %v353
  %v436 = vpop.permute.xlu0 %435
  %439 = vset.pattern.permute.xlu0 0
  %440 = vperm.xlu0 %439, %v354
  %v441 = vpop.permute.xlu0 %440
  %444 = vset.pattern.permute.xlu0 0
  %445 = vperm.xlu0 %444, %v355
  %v446 = vpop.permute.xlu0 %445
  %449 = vset.pattern.permute.xlu0 0
  %450 = vperm.xlu0 %449, %v356
  %v451 = vpop.permute.xlu0 %450
  %454 = vset.pattern.permute.xlu0 0
  %455 = vperm.xlu0 %454, %v357
  %v456 = vpop.permute.xlu0 %455
  %459 = vset.pattern.permute.xlu0 0
  %460 = vperm.xlu0 %459, %v358
  %v461 = vpop.permute.xlu0 %460
  %v463 = vmul.f32 %v14, %v401
  %v464 = vmul.f32 %v15, %v406
  %v465 = vmul.f32 %v16, %v411
  %v466 = vmul.f32 %v17, %v416
  %v467 = vmul.f32 %v18, %v421
  %v468 = vmul.f32 %v19, %v426
  %v469 = vmul.f32 %v20, %v431
  %v470 = vmul.f32 %v21, %v436
  %v471 = vmul.f32 %v22, %v441
  %v472 = vmul.f32 %v23, %v446
  %v473 = vmul.f32 %v24, %v451
  %v474 = vmul.f32 %v25, %v456
  %v475 = vmul.f32 %v26, %v461
  %v476 = vmul.f32 %v27, %v401
  %v477 = vmul.f32 %v28, %v406
  %v478 = vmul.f32 %v29, %v411
  %v479 = vmul.f32 %v30, %v416
  %v480 = vmul.f32 %v31, %v421
  %v481 = vmul.f32 %v32, %v426
  %v482 = vmul.f32 %v33, %v431
  %v483 = vmul.f32 %v34, %v436
  %v484 = vmul.f32 %v35, %v441
  %v485 = vmul.f32 %v36, %v446
  %v486 = vmul.f32 %v37, %v451
  %v487 = vmul.f32 %v38, %v456
  %v488 = vmul.f32 %v39, %v461
  %490 = vset.pattern.permute.xlu0 0
  %491 = vperm.xlu0 %490, %v385
  %v492 = vpop.permute.xlu0 %491
  %495 = vset.pattern.permute.xlu0 0
  %496 = vperm.xlu0 %495, %v386
  %v497 = vpop.permute.xlu0 %496
  %500 = vset.pattern.permute.xlu0 0
  %501 = vperm.xlu0 %500, %v387
  %v502 = vpop.permute.xlu0 %501
  %505 = vset.pattern.permute.xlu0 0
  %506 = vperm.xlu0 %505, %v388
  %v507 = vpop.permute.xlu0 %506
  %510 = vset.pattern.permute.xlu0 0
  %511 = vperm.xlu0 %510, %v389
  %v512 = vpop.permute.xlu0 %511
  %515 = vset.pattern.permute.xlu0 0
  %516 = vperm.xlu0 %515, %v390
  %v517 = vpop.permute.xlu0 %516
  %520 = vset.pattern.permute.xlu0 0
  %521 = vperm.xlu0 %520, %v391
  %v522 = vpop.permute.xlu0 %521
  %525 = vset.pattern.permute.xlu0 0
  %526 = vperm.xlu0 %525, %v392
  %v527 = vpop.permute.xlu0 %526
  %530 = vset.pattern.permute.xlu0 0
  %531 = vperm.xlu0 %530, %v393
  %v532 = vpop.permute.xlu0 %531
  %535 = vset.pattern.permute.xlu0 0
  %536 = vperm.xlu0 %535, %v394
  %v537 = vpop.permute.xlu0 %536
  %540 = vset.pattern.permute.xlu0 0
  %541 = vperm.xlu0 %540, %v395
  %v542 = vpop.permute.xlu0 %541
  %545 = vset.pattern.permute.xlu0 0
  %546 = vperm.xlu0 %545, %v396
  %v547 = vpop.permute.xlu0 %546
  %550 = vset.pattern.permute.xlu0 0
  %551 = vperm.xlu0 %550, %v397
  %v552 = vpop.permute.xlu0 %551
  %v554 = vadd.f32 %v463, %v492
  %v555 = vadd.f32 %v464, %v497
  %v556 = vadd.f32 %v465, %v502
  %v557 = vadd.f32 %v466, %v507
  %v558 = vadd.f32 %v467, %v512
  %v559 = vadd.f32 %v468, %v517
  %v560 = vadd.f32 %v469, %v522
  %v561 = vadd.f32 %v470, %v527
  %v562 = vadd.f32 %v471, %v532
  %v563 = vadd.f32 %v472, %v537
  %v564 = vadd.f32 %v473, %v542
  %v565 = vadd.f32 %v474, %v547
  %v566 = vadd.f32 %v475, %v552
  %v567 = vadd.f32 %v476, %v492
  %v568 = vadd.f32 %v477, %v497
  %v569 = vadd.f32 %v478, %v502
  %v570 = vadd.f32 %v479, %v507
  %v571 = vadd.f32 %v480, %v512
  %v572 = vadd.f32 %v481, %v517
  %v573 = vadd.f32 %v482, %v522
  %v574 = vadd.f32 %v483, %v527
  %v575 = vadd.f32 %v484, %v532
  %v576 = vadd.f32 %v485, %v537
  %v577 = vadd.f32 %v486, %v542
  %v578 = vadd.f32 %v487, %v547
  %v579 = vadd.f32 %v488, %v552
  %580 = vst.msk [vmem:[%s3] sm:$0xff] %vm40, %v554
  %581 = vst.msk [vmem:[%s3 + $0x8] sm:$0xff] %vm40, %v555
  %582 = vst.msk [vmem:[%s3 + $0x10] sm:$0xff] %vm40, %v556
  %583 = vst.msk [vmem:[%s3 + $0x18] sm:$0xff] %vm40, %v557
  %584 = vst.msk [vmem:[%s3 + $0x20] sm:$0xff] %vm40, %v558
  %585 = vst.msk [vmem:[%s3 + $0x28] sm:$0xff] %vm40, %v559
  %586 = vst.msk [vmem:[%s3 + $0x30] sm:$0xff] %vm40, %v560
  %587 = vst.msk [vmem:[%s3 + $0x38] sm:$0xff] %vm40, %v561
  %588 = vst.msk [vmem:[%s3 + $0x40] sm:$0xff] %vm40, %v562
  %589 = vst.msk [vmem:[%s3 + $0x48] sm:$0xff] %vm40, %v563
  %590 = vst.msk [vmem:[%s3 + $0x50] sm:$0xff] %vm40, %v564
  %591 = vst.msk [vmem:[%s3 + $0x58] sm:$0xff] %vm40, %v565
  %592 = vst.msk [vmem:[%s3 + $0x60] sm:$0xf] %vm77, %v566
  %593 = vst.msk [vmem:[%s3 + $0x68] sm:$0xff] %vm40, %v567
  %594 = vst.msk [vmem:[%s3 + $0x70] sm:$0xff] %vm40, %v568
  %595 = vst.msk [vmem:[%s3 + $0x78] sm:$0xff] %vm40, %v569
  %596 = vst.msk [vmem:[%s3 + $0x80] sm:$0xff] %vm40, %v570
  %597 = vst.msk [vmem:[%s3 + $0x88] sm:$0xff] %vm40, %v571
  %598 = vst.msk [vmem:[%s3 + $0x90] sm:$0xff] %vm40, %v572
  %599 = vst.msk [vmem:[%s3 + $0x98] sm:$0xff] %vm40, %v573
  %600 = vst.msk [vmem:[%s3 + $0xa0] sm:$0xff] %vm40, %v574
  %601 = vst.msk [vmem:[%s3 + $0xa8] sm:$0xff] %vm40, %v575
  %602 = vst.msk [vmem:[%s3 + $0xb0] sm:$0xff] %vm40, %v576
  %603 = vst.msk [vmem:[%s3 + $0xb8] sm:$0xff] %vm40, %v577
  %604 = vst.msk [vmem:[%s3 + $0xc0] sm:$0xff] %vm40, %v578
  %605 = vst.msk [vmem:[%s3 + $0xc8] sm:$0xf] %vm77, %v579
  // Predicated region
  $region14: #{tpu_custom_call.1} parent=0 // pred_check
    _
  $region15: #{tpu_custom_call.1} parent=0 // pred_check_branch
    %607 = sbr.rel (0) target = $region17
  $region16: #{tpu_custom_call.1} parent=0 // pred_region
    _
  $region17: #{tpu_custom_call.1} parent=0 // pred_fallthru
    _
  // Predicated region
  $region18: #{tpu_custom_call.1} parent=0 // pred_check
    _
  $region19: #{tpu_custom_call.1} parent=0 // pred_check_branch
    %609 = sbr.rel (0) target = $region21
  $region20: #{tpu_custom_call.1} parent=0 // pred_region
    _
  $region21: #{tpu_custom_call.1} parent=0 // pred_fallthru
    _

</llo_original>
